<compile_context>
chip_gen: v7x
topology: tpu7x:2x2x1
jax: 0.10.0
libtpu: 0.0.40
codegen_flags: <defaults>
</compile_context>

<pallas_src>
import jax
import jax.numpy as jnp
from jax.experimental import pallas as pl
from jax.experimental.pallas import tpu as pltpu

NUM_ZONES = 9
IN_F = 2
HID_F = 3
OUT_F = 4


def combined_kernel(x_ref, w1_ref, b1_ref, w2_ref, b2_ref, act_ref, prob_ref):
    # x_ref:  [2, 9, TB]   (feature, zone-on-sublane, batch-on-lane)
    # w1_ref: [6, 9, 1]    row i*HID_F + j  ->  w1[z, i, j]
    # b1_ref: [3, 9, 1]
    # w2_ref: [12, 9, 1]   row j*OUT_F + k  ->  w2[z, j, k]
    # b2_ref: [4, 9, 1]
    # act_ref: [9, TB] int32   prob_ref: [9, TB] float32
    x0 = x_ref[0]                      # [9, TB]
    x1 = x_ref[1]                      # [9, TB]

    # Layer 1: 2 -> 3, ReLU.  Pure VPU broadcast FMAs (weights broadcast over lanes).
    h = []
    for j in range(HID_F):
        hj = x0 * w1_ref[0 * HID_F + j] + x1 * w1_ref[1 * HID_F + j] + b1_ref[j]
        h.append(jnp.maximum(hj, 0.0))

    # Layer 2: 3 -> 4 logits.
    o = []
    for k in range(OUT_F):
        ok = (h[0] * w2_ref[0 * OUT_F + k]
              + h[1] * w2_ref[1 * OUT_F + k]
              + h[2] * w2_ref[2 * OUT_F + k]
              + b2_ref[k])
        o.append(ok)

    # Softmax is monotonic: argmax(logits) == argmax(softmax), and
    # max softmax prob == 1 / sum(exp(o - max(o))).
    m = jnp.maximum(jnp.maximum(o[0], o[1]), jnp.maximum(o[2], o[3]))
    s = (jnp.exp(o[0] - m) + jnp.exp(o[1] - m)
         + jnp.exp(o[2] - m) + jnp.exp(o[3] - m))
    prob_ref[...] = pl.reciprocal(s, approx=False)   # exact, keeps 1e-5 tolerance

    # First-occurrence argmax on the logits.
    idx3 = jnp.full(m.shape, 3, dtype=jnp.int32)
    idx = jnp.where(o[0] == m, 0,
          jnp.where(o[1] == m, 1,
          jnp.where(o[2] == m, 2, idx3)))
    act_ref[...] = idx.astype(jnp.int32)


def combined_network(inputs, params, *, tb=512):
    """inputs: [batch, 9, 2] float32; params: dict of stacked zone weights."""
    B = inputs.shape[0]
    # Batch on lanes: [B, 9, 2] -> [2, 9, B].
    x_zm = jnp.transpose(inputs.astype(jnp.float32), (2, 1, 0))

    grid_b = pl.cdiv(B, tb)
    b_pad = grid_b * tb
    if b_pad != B:
        x_zm = jnp.pad(x_zm, ((0, 0), (0, 0), (0, b_pad - B)))

    # Repack weights so each coefficient is a [9, 1] column (zone on sublane,
    # broadcast along lanes).
    w1 = jnp.transpose(params["w1"], (1, 2, 0)).reshape(IN_F * HID_F, NUM_ZONES, 1)
    b1 = jnp.transpose(params["b1"], (1, 0)).reshape(HID_F, NUM_ZONES, 1)
    w2 = jnp.transpose(params["w2"], (1, 2, 0)).reshape(HID_F * OUT_F, NUM_ZONES, 1)
    b2 = jnp.transpose(params["b2"], (1, 0)).reshape(OUT_F, NUM_ZONES, 1)

    def w_spec(n):
        # Tiny, grid-invariant weight blocks stay resident in VMEM.
        return pl.BlockSpec((n, NUM_ZONES, 1), lambda b: (0, 0, 0))

    out_spec = pl.BlockSpec((NUM_ZONES, tb), lambda b: (0, b))

    actions, probs = pl.pallas_call(
        combined_kernel,
        out_shape=(
            jax.ShapeDtypeStruct((NUM_ZONES, b_pad), jnp.int32),
            jax.ShapeDtypeStruct((NUM_ZONES, b_pad), jnp.float32),
        ),
        grid_spec=pltpu.PrefetchScalarGridSpec(
            num_scalar_prefetch=0,
            grid=(grid_b,),
            in_specs=[
                pl.BlockSpec((IN_F, NUM_ZONES, tb), lambda b: (0, 0, b)),
                w_spec(IN_F * HID_F),
                w_spec(HID_F),
                w_spec(HID_F * OUT_F),
                w_spec(OUT_F),
            ],
            out_specs=[out_spec, out_spec],
        ),
        compiler_params=pltpu.CompilerParams(
            dimension_semantics=("parallel",),      # shard batch tiles across TCs (v7x)
            vmem_limit_bytes=32 * 1024 * 1024,      # tiny footprint; explicit for v7x
        ),
    )(x_zm, w1, b1, w2, b2)

    return actions[:, :B], probs[:, :B]  # [9, B] each


def init_params(key):
    # Deterministic init mimicking nn.Linear: U(-1/sqrt(fan_in), 1/sqrt(fan_in)).
    k1, k2, k3, k4 = jax.random.split(key, 4)
    lim1 = 1.0 / jnp.sqrt(IN_F)
    lim2 = 1.0 / jnp.sqrt(HID_F)
    return {
        "w1": jax.random.uniform(k1, (NUM_ZONES, IN_F, HID_F), jnp.float32, -lim1, lim1),
        "b1": jax.random.uniform(k2, (NUM_ZONES, HID_F), jnp.float32, -lim1, lim1),
        "w2": jax.random.uniform(k3, (NUM_ZONES, HID_F, OUT_F), jnp.float32, -lim2, lim2),
        "b2": jax.random.uniform(k4, (NUM_ZONES, OUT_F), jnp.float32, -lim2, lim2),
    }


def reference(inputs, params):
    # Pure-JAX reference of the PyTorch forward.
    x = jnp.transpose(inputs, (1, 0, 2))                               # [9, B, 2]
    h = jnp.maximum(
        jnp.einsum("zbi,zih->zbh", x, params["w1"]) + params["b1"][:, None, :], 0.0)
    o = jnp.einsum("zbh,zho->zbo", h, params["w2"]) + params["b2"][:, None, :]
    p = jax.nn.softmax(o, axis=-1)
    return jnp.argmax(p, axis=-1).astype(jnp.int32), jnp.max(p, axis=-1)


if __name__ == "__main__":
    key = jax.random.PRNGKey(0)
    pkey, xkey = jax.random.split(key)
    params = init_params(pkey)

    batch = 2
    inputs = jax.random.normal(xkey, (batch, NUM_ZONES, IN_F), jnp.float32)

    actions, probs = combined_network(inputs, params)
    jax.block_until_ready((actions, probs))

    ref_actions, ref_probs = reference(inputs, params)
    assert actions.shape == (NUM_ZONES, batch) and probs.shape == (NUM_ZONES, batch)
    assert jnp.array_equal(actions, ref_actions)
    assert jnp.allclose(probs, ref_probs, atol=1e-5, rtol=1e-5)

    print("KERNEL_OK")
</pallas_src>

<mosaic_0001>
module attributes {stable_mosaic.version = 11 : i64} {
  func.func @combined_kernel(%arg0: i32, %arg1: memref<2x9x512xf32, #tpu.memory_space<vmem>>, %arg2: memref<6x9x1xf32, #tpu.memory_space<vmem>>, %arg3: memref<3x9x1xf32, #tpu.memory_space<vmem>>, %arg4: memref<12x9x1xf32, #tpu.memory_space<vmem>>, %arg5: memref<4x9x1xf32, #tpu.memory_space<vmem>>, %arg6: memref<9x512xi32, #tpu.memory_space<vmem>>, %arg7: memref<9x512xf32, #tpu.memory_space<vmem>>) attributes {dimension_semantics = [#tpu.dimension_semantics<parallel>], iteration_bounds = array<i64: 1>, scalar_prefetch = 0 : i64, scratch_operands = 0 : i64, tpu.core_type = #tpu.core_type<tc>, window_params = [{transform_indices = @transform_0, window_bounds = array<i64: 2, 9, 512>}, {pipeline_mode = #tpu.pipeline_mode<synchronous>, transform_indices = @transform_1, window_bounds = array<i64: 6, 9, 1>}, {pipeline_mode = #tpu.pipeline_mode<synchronous>, transform_indices = @transform_2, window_bounds = array<i64: 3, 9, 1>}, {pipeline_mode = #tpu.pipeline_mode<synchronous>, transform_indices = @transform_3, window_bounds = array<i64: 12, 9, 1>}, {pipeline_mode = #tpu.pipeline_mode<synchronous>, transform_indices = @transform_4, window_bounds = array<i64: 4, 9, 1>}, {transform_indices = @transform_5, window_bounds = array<i64: 9, 512>}, {transform_indices = @transform_6, window_bounds = array<i64: 9, 512>}]} {
    %c0 = arith.constant 0 : index
    %c0_0 = arith.constant 0 : index
    %c0_1 = arith.constant 0 : index
    %0 = vector.load %arg1[%c0, %c0_0, %c0_1] : memref<2x9x512xf32, #tpu.memory_space<vmem>>, vector<1x9x512xf32>
    %1 = vector.shape_cast %0 : vector<1x9x512xf32> to vector<9x512xf32>
    %c1 = arith.constant 1 : index
    %c0_2 = arith.constant 0 : index
    %c0_3 = arith.constant 0 : index
    %2 = vector.load %arg1[%c1, %c0_2, %c0_3] : memref<2x9x512xf32, #tpu.memory_space<vmem>>, vector<1x9x512xf32>
    %3 = vector.shape_cast %2 : vector<1x9x512xf32> to vector<9x512xf32>
    %c0_4 = arith.constant 0 : index
    %c0_5 = arith.constant 0 : index
    %c0_6 = arith.constant 0 : index
    %4 = vector.load %arg2[%c0_4, %c0_5, %c0_6] : memref<6x9x1xf32, #tpu.memory_space<vmem>>, vector<1x9x1xf32>
    %5 = vector.shape_cast %4 : vector<1x9x1xf32> to vector<9x1xf32>
    %6 = vector.broadcast %5 : vector<9x1xf32> to vector<9x512xf32>
    %7 = arith.mulf %1, %6 : vector<9x512xf32>
    %c3 = arith.constant 3 : index
    %c0_7 = arith.constant 0 : index
    %c0_8 = arith.constant 0 : index
    %8 = vector.load %arg2[%c3, %c0_7, %c0_8] : memref<6x9x1xf32, #tpu.memory_space<vmem>>, vector<1x9x1xf32>
    %9 = vector.shape_cast %8 : vector<1x9x1xf32> to vector<9x1xf32>
    %10 = vector.broadcast %9 : vector<9x1xf32> to vector<9x512xf32>
    %11 = arith.mulf %3, %10 : vector<9x512xf32>
    %12 = arith.addf %7, %11 : vector<9x512xf32>
    %c0_9 = arith.constant 0 : index
    %c0_10 = arith.constant 0 : index
    %c0_11 = arith.constant 0 : index
    %13 = vector.load %arg3[%c0_9, %c0_10, %c0_11] : memref<3x9x1xf32, #tpu.memory_space<vmem>>, vector<1x9x1xf32>
    %14 = vector.shape_cast %13 : vector<1x9x1xf32> to vector<9x1xf32>
    %15 = vector.broadcast %14 : vector<9x1xf32> to vector<9x512xf32>
    %16 = arith.addf %12, %15 : vector<9x512xf32>
    %cst = arith.constant 0.000000e+00 : f32
    %17 = vector.broadcast %cst : f32 to vector<9x512xf32>
    %18 = arith.maximumf %16, %17 : vector<9x512xf32>
    %c1_12 = arith.constant 1 : index
    %c0_13 = arith.constant 0 : index
    %c0_14 = arith.constant 0 : index
    %19 = vector.load %arg2[%c1_12, %c0_13, %c0_14] : memref<6x9x1xf32, #tpu.memory_space<vmem>>, vector<1x9x1xf32>
    %20 = vector.shape_cast %19 : vector<1x9x1xf32> to vector<9x1xf32>
    %21 = vector.broadcast %20 : vector<9x1xf32> to vector<9x512xf32>
    %22 = arith.mulf %1, %21 : vector<9x512xf32>
    %c4 = arith.constant 4 : index
    %c0_15 = arith.constant 0 : index
    %c0_16 = arith.constant 0 : index
    %23 = vector.load %arg2[%c4, %c0_15, %c0_16] : memref<6x9x1xf32, #tpu.memory_space<vmem>>, vector<1x9x1xf32>
    %24 = vector.shape_cast %23 : vector<1x9x1xf32> to vector<9x1xf32>
    %25 = vector.broadcast %24 : vector<9x1xf32> to vector<9x512xf32>
    %26 = arith.mulf %3, %25 : vector<9x512xf32>
    %27 = arith.addf %22, %26 : vector<9x512xf32>
    %c1_17 = arith.constant 1 : index
    %c0_18 = arith.constant 0 : index
    %c0_19 = arith.constant 0 : index
    %28 = vector.load %arg3[%c1_17, %c0_18, %c0_19] : memref<3x9x1xf32, #tpu.memory_space<vmem>>, vector<1x9x1xf32>
    %29 = vector.shape_cast %28 : vector<1x9x1xf32> to vector<9x1xf32>
    %30 = vector.broadcast %29 : vector<9x1xf32> to vector<9x512xf32>
    %31 = arith.addf %27, %30 : vector<9x512xf32>
    %cst_20 = arith.constant 0.000000e+00 : f32
    %32 = vector.broadcast %cst_20 : f32 to vector<9x512xf32>
    %33 = arith.maximumf %31, %32 : vector<9x512xf32>
    %c2 = arith.constant 2 : index
    %c0_21 = arith.constant 0 : index
    %c0_22 = arith.constant 0 : index
    %34 = vector.load %arg2[%c2, %c0_21, %c0_22] : memref<6x9x1xf32, #tpu.memory_space<vmem>>, vector<1x9x1xf32>
    %35 = vector.shape_cast %34 : vector<1x9x1xf32> to vector<9x1xf32>
    %36 = vector.broadcast %35 : vector<9x1xf32> to vector<9x512xf32>
    %37 = arith.mulf %1, %36 : vector<9x512xf32>
    %c5 = arith.constant 5 : index
    %c0_23 = arith.constant 0 : index
    %c0_24 = arith.constant 0 : index
    %38 = vector.load %arg2[%c5, %c0_23, %c0_24] : memref<6x9x1xf32, #tpu.memory_space<vmem>>, vector<1x9x1xf32>
    %39 = vector.shape_cast %38 : vector<1x9x1xf32> to vector<9x1xf32>
    %40 = vector.broadcast %39 : vector<9x1xf32> to vector<9x512xf32>
    %41 = arith.mulf %3, %40 : vector<9x512xf32>
    %42 = arith.addf %37, %41 : vector<9x512xf32>
    %c2_25 = arith.constant 2 : index
    %c0_26 = arith.constant 0 : index
    %c0_27 = arith.constant 0 : index
    %43 = vector.load %arg3[%c2_25, %c0_26, %c0_27] : memref<3x9x1xf32, #tpu.memory_space<vmem>>, vector<1x9x1xf32>
    %44 = vector.shape_cast %43 : vector<1x9x1xf32> to vector<9x1xf32>
    %45 = vector.broadcast %44 : vector<9x1xf32> to vector<9x512xf32>
    %46 = arith.addf %42, %45 : vector<9x512xf32>
    %cst_28 = arith.constant 0.000000e+00 : f32
    %47 = vector.broadcast %cst_28 : f32 to vector<9x512xf32>
    %48 = arith.maximumf %46, %47 : vector<9x512xf32>
    %c0_29 = arith.constant 0 : index
    %c0_30 = arith.constant 0 : index
    %c0_31 = arith.constant 0 : index
    %49 = vector.load %arg4[%c0_29, %c0_30, %c0_31] : memref<12x9x1xf32, #tpu.memory_space<vmem>>, vector<1x9x1xf32>
    %50 = vector.shape_cast %49 : vector<1x9x1xf32> to vector<9x1xf32>
    %51 = vector.broadcast %50 : vector<9x1xf32> to vector<9x512xf32>
    %52 = arith.mulf %18, %51 : vector<9x512xf32>
    %c4_32 = arith.constant 4 : index
    %c0_33 = arith.constant 0 : index
    %c0_34 = arith.constant 0 : index
    %53 = vector.load %arg4[%c4_32, %c0_33, %c0_34] : memref<12x9x1xf32, #tpu.memory_space<vmem>>, vector<1x9x1xf32>
    %54 = vector.shape_cast %53 : vector<1x9x1xf32> to vector<9x1xf32>
    %55 = vector.broadcast %54 : vector<9x1xf32> to vector<9x512xf32>
    %56 = arith.mulf %33, %55 : vector<9x512xf32>
    %57 = arith.addf %52, %56 : vector<9x512xf32>
    %c8 = arith.constant 8 : index
    %c0_35 = arith.constant 0 : index
    %c0_36 = arith.constant 0 : index
    %58 = vector.load %arg4[%c8, %c0_35, %c0_36] : memref<12x9x1xf32, #tpu.memory_space<vmem>>, vector<1x9x1xf32>
    %59 = vector.shape_cast %58 : vector<1x9x1xf32> to vector<9x1xf32>
    %60 = vector.broadcast %59 : vector<9x1xf32> to vector<9x512xf32>
    %61 = arith.mulf %48, %60 : vector<9x512xf32>
    %62 = arith.addf %57, %61 : vector<9x512xf32>
    %c0_37 = arith.constant 0 : index
    %c0_38 = arith.constant 0 : index
    %c0_39 = arith.constant 0 : index
    %63 = vector.load %arg5[%c0_37, %c0_38, %c0_39] : memref<4x9x1xf32, #tpu.memory_space<vmem>>, vector<1x9x1xf32>
    %64 = vector.shape_cast %63 : vector<1x9x1xf32> to vector<9x1xf32>
    %65 = vector.broadcast %64 : vector<9x1xf32> to vector<9x512xf32>
    %66 = arith.addf %62, %65 : vector<9x512xf32>
    %c1_40 = arith.constant 1 : index
    %c0_41 = arith.constant 0 : index
    %c0_42 = arith.constant 0 : index
    %67 = vector.load %arg4[%c1_40, %c0_41, %c0_42] : memref<12x9x1xf32, #tpu.memory_space<vmem>>, vector<1x9x1xf32>
    %68 = vector.shape_cast %67 : vector<1x9x1xf32> to vector<9x1xf32>
    %69 = vector.broadcast %68 : vector<9x1xf32> to vector<9x512xf32>
    %70 = arith.mulf %18, %69 : vector<9x512xf32>
    %c5_43 = arith.constant 5 : index
    %c0_44 = arith.constant 0 : index
    %c0_45 = arith.constant 0 : index
    %71 = vector.load %arg4[%c5_43, %c0_44, %c0_45] : memref<12x9x1xf32, #tpu.memory_space<vmem>>, vector<1x9x1xf32>
    %72 = vector.shape_cast %71 : vector<1x9x1xf32> to vector<9x1xf32>
    %73 = vector.broadcast %72 : vector<9x1xf32> to vector<9x512xf32>
    %74 = arith.mulf %33, %73 : vector<9x512xf32>
    %75 = arith.addf %70, %74 : vector<9x512xf32>
    %c9 = arith.constant 9 : index
    %c0_46 = arith.constant 0 : index
    %c0_47 = arith.constant 0 : index
    %76 = vector.load %arg4[%c9, %c0_46, %c0_47] : memref<12x9x1xf32, #tpu.memory_space<vmem>>, vector<1x9x1xf32>
    %77 = vector.shape_cast %76 : vector<1x9x1xf32> to vector<9x1xf32>
    %78 = vector.broadcast %77 : vector<9x1xf32> to vector<9x512xf32>
    %79 = arith.mulf %48, %78 : vector<9x512xf32>
    %80 = arith.addf %75, %79 : vector<9x512xf32>
    %c1_48 = arith.constant 1 : index
    %c0_49 = arith.constant 0 : index
    %c0_50 = arith.constant 0 : index
    %81 = vector.load %arg5[%c1_48, %c0_49, %c0_50] : memref<4x9x1xf32, #tpu.memory_space<vmem>>, vector<1x9x1xf32>
    %82 = vector.shape_cast %81 : vector<1x9x1xf32> to vector<9x1xf32>
    %83 = vector.broadcast %82 : vector<9x1xf32> to vector<9x512xf32>
    %84 = arith.addf %80, %83 : vector<9x512xf32>
    %c2_51 = arith.constant 2 : index
    %c0_52 = arith.constant 0 : index
    %c0_53 = arith.constant 0 : index
    %85 = vector.load %arg4[%c2_51, %c0_52, %c0_53] : memref<12x9x1xf32, #tpu.memory_space<vmem>>, vector<1x9x1xf32>
    %86 = vector.shape_cast %85 : vector<1x9x1xf32> to vector<9x1xf32>
    %87 = vector.broadcast %86 : vector<9x1xf32> to vector<9x512xf32>
    %88 = arith.mulf %18, %87 : vector<9x512xf32>
    %c6 = arith.constant 6 : index
    %c0_54 = arith.constant 0 : index
    %c0_55 = arith.constant 0 : index
    %89 = vector.load %arg4[%c6, %c0_54, %c0_55] : memref<12x9x1xf32, #tpu.memory_space<vmem>>, vector<1x9x1xf32>
    %90 = vector.shape_cast %89 : vector<1x9x1xf32> to vector<9x1xf32>
    %91 = vector.broadcast %90 : vector<9x1xf32> to vector<9x512xf32>
    %92 = arith.mulf %33, %91 : vector<9x512xf32>
    %93 = arith.addf %88, %92 : vector<9x512xf32>
    %c10 = arith.constant 10 : index
    %c0_56 = arith.constant 0 : index
    %c0_57 = arith.constant 0 : index
    %94 = vector.load %arg4[%c10, %c0_56, %c0_57] : memref<12x9x1xf32, #tpu.memory_space<vmem>>, vector<1x9x1xf32>
    %95 = vector.shape_cast %94 : vector<1x9x1xf32> to vector<9x1xf32>
    %96 = vector.broadcast %95 : vector<9x1xf32> to vector<9x512xf32>
    %97 = arith.mulf %48, %96 : vector<9x512xf32>
    %98 = arith.addf %93, %97 : vector<9x512xf32>
    %c2_58 = arith.constant 2 : index
    %c0_59 = arith.constant 0 : index
    %c0_60 = arith.constant 0 : index
    %99 = vector.load %arg5[%c2_58, %c0_59, %c0_60] : memref<4x9x1xf32, #tpu.memory_space<vmem>>, vector<1x9x1xf32>
    %100 = vector.shape_cast %99 : vector<1x9x1xf32> to vector<9x1xf32>
    %101 = vector.broadcast %100 : vector<9x1xf32> to vector<9x512xf32>
    %102 = arith.addf %98, %101 : vector<9x512xf32>
    %c3_61 = arith.constant 3 : index
    %c0_62 = arith.constant 0 : index
    %c0_63 = arith.constant 0 : index
    %103 = vector.load %arg4[%c3_61, %c0_62, %c0_63] : memref<12x9x1xf32, #tpu.memory_space<vmem>>, vector<1x9x1xf32>
    %104 = vector.shape_cast %103 : vector<1x9x1xf32> to vector<9x1xf32>
    %105 = vector.broadcast %104 : vector<9x1xf32> to vector<9x512xf32>
    %106 = arith.mulf %18, %105 : vector<9x512xf32>
    %c7 = arith.constant 7 : index
    %c0_64 = arith.constant 0 : index
    %c0_65 = arith.constant 0 : index
    %107 = vector.load %arg4[%c7, %c0_64, %c0_65] : memref<12x9x1xf32, #tpu.memory_space<vmem>>, vector<1x9x1xf32>
    %108 = vector.shape_cast %107 : vector<1x9x1xf32> to vector<9x1xf32>
    %109 = vector.broadcast %108 : vector<9x1xf32> to vector<9x512xf32>
    %110 = arith.mulf %33, %109 : vector<9x512xf32>
    %111 = arith.addf %106, %110 : vector<9x512xf32>
    %c11 = arith.constant 11 : index
    %c0_66 = arith.constant 0 : index
    %c0_67 = arith.constant 0 : index
    %112 = vector.load %arg4[%c11, %c0_66, %c0_67] : memref<12x9x1xf32, #tpu.memory_space<vmem>>, vector<1x9x1xf32>
    %113 = vector.shape_cast %112 : vector<1x9x1xf32> to vector<9x1xf32>
    %114 = vector.broadcast %113 : vector<9x1xf32> to vector<9x512xf32>
    %115 = arith.mulf %48, %114 : vector<9x512xf32>
    %116 = arith.addf %111, %115 : vector<9x512xf32>
    %c3_68 = arith.constant 3 : index
    %c0_69 = arith.constant 0 : index
    %c0_70 = arith.constant 0 : index
    %117 = vector.load %arg5[%c3_68, %c0_69, %c0_70] : memref<4x9x1xf32, #tpu.memory_space<vmem>>, vector<1x9x1xf32>
    %118 = vector.shape_cast %117 : vector<1x9x1xf32> to vector<9x1xf32>
    %119 = vector.broadcast %118 : vector<9x1xf32> to vector<9x512xf32>
    %120 = arith.addf %116, %119 : vector<9x512xf32>
    %121 = arith.maximumf %66, %84 : vector<9x512xf32>
    %122 = arith.maximumf %102, %120 : vector<9x512xf32>
    %123 = arith.maximumf %121, %122 : vector<9x512xf32>
    %124 = arith.subf %66, %123 : vector<9x512xf32>
    %125 = math.exp %124 : vector<9x512xf32>
    %126 = arith.subf %84, %123 : vector<9x512xf32>
    %127 = math.exp %126 : vector<9x512xf32>
    %128 = arith.addf %125, %127 : vector<9x512xf32>
    %129 = arith.subf %102, %123 : vector<9x512xf32>
    %130 = math.exp %129 : vector<9x512xf32>
    %131 = arith.addf %128, %130 : vector<9x512xf32>
    %132 = arith.subf %120, %123 : vector<9x512xf32>
    %133 = math.exp %132 : vector<9x512xf32>
    %134 = arith.addf %131, %133 : vector<9x512xf32>
    %135 = tpu.reciprocal %134 : vector<9x512xf32> -> vector<9x512xf32>
    %c0_71 = arith.constant 0 : index
    %c0_72 = arith.constant 0 : index
    %136 = vector.load %arg7[%c0_71, %c0_72] : memref<9x512xf32, #tpu.memory_space<vmem>>, vector<9x512xf32>
    tpu.vector_store %arg7[%c0_71, %c0_72], %135 {strides = array<i32>} : memref<9x512xf32, #tpu.memory_space<vmem>>, vector<9x512xf32>,
    %c3_i32 = arith.constant 3 : i32
    %137 = vector.broadcast %c3_i32 : i32 to vector<9x512xi32>
    %138 = arith.cmpf oeq, %66, %123 : vector<9x512xf32>
    %139 = arith.cmpf oeq, %84, %123 : vector<9x512xf32>
    %140 = arith.cmpf oeq, %102, %123 : vector<9x512xf32>
    %c2_i32 = arith.constant 2 : i32
    %141 = vector.broadcast %c2_i32 : i32 to vector<9x512xi32>
    %142 = arith.select %140, %141, %137 : vector<9x512xi1>, vector<9x512xi32>
    %c1_i32 = arith.constant 1 : i32
    %143 = vector.broadcast %c1_i32 : i32 to vector<9x512xi32>
    %144 = arith.select %139, %143, %142 : vector<9x512xi1>, vector<9x512xi32>
    %c0_i32 = arith.constant 0 : i32
    %145 = vector.broadcast %c0_i32 : i32 to vector<9x512xi32>
    %146 = arith.select %138, %145, %144 : vector<9x512xi1>, vector<9x512xi32>
    %c0_73 = arith.constant 0 : index
    %c0_74 = arith.constant 0 : index
    %147 = vector.load %arg6[%c0_73, %c0_74] : memref<9x512xi32, #tpu.memory_space<vmem>>, vector<9x512xi32>
    tpu.vector_store %arg6[%c0_73, %c0_74], %146 {strides = array<i32>} : memref<9x512xi32, #tpu.memory_space<vmem>>, vector<9x512xi32>,
    return
  }
  func.func @transform_0(%arg0: i32) -> (i32, i32, i32) {
    %c0_i32 = arith.constant 0 : i32
    %c0_i32_0 = arith.constant 0 : i32
    %c0_i32_1 = arith.constant 0 : i32
    return %c0_i32, %c0_i32_0, %arg0 : i32, i32, i32
  }
  func.func @transform_1(%arg0: i32) -> (i32, i32, i32) {
    %c0_i32 = arith.constant 0 : i32
    %c0_i32_0 = arith.constant 0 : i32
    %c0_i32_1 = arith.constant 0 : i32
    %c0_i32_2 = arith.constant 0 : i32
    return %c0_i32, %c0_i32_0, %c0_i32_1 : i32, i32, i32
  }
  func.func @transform_2(%arg0: i32) -> (i32, i32, i32) {
    %c0_i32 = arith.constant 0 : i32
    %c0_i32_0 = arith.constant 0 : i32
    %c0_i32_1 = arith.constant 0 : i32
    %c0_i32_2 = arith.constant 0 : i32
    return %c0_i32, %c0_i32_0, %c0_i32_1 : i32, i32, i32
  }
  func.func @transform_3(%arg0: i32) -> (i32, i32, i32) {
    %c0_i32 = arith.constant 0 : i32
    %c0_i32_0 = arith.constant 0 : i32
    %c0_i32_1 = arith.constant 0 : i32
    %c0_i32_2 = arith.constant 0 : i32
    return %c0_i32, %c0_i32_0, %c0_i32_1 : i32, i32, i32
  }
  func.func @transform_4(%arg0: i32) -> (i32, i32, i32) {
    %c0_i32 = arith.constant 0 : i32
    %c0_i32_0 = arith.constant 0 : i32
    %c0_i32_1 = arith.constant 0 : i32
    %c0_i32_2 = arith.constant 0 : i32
    return %c0_i32, %c0_i32_0, %c0_i32_1 : i32, i32, i32
  }
  func.func @transform_5(%arg0: i32) -> (i32, i32) {
    %c0_i32 = arith.constant 0 : i32
    %c0_i32_0 = arith.constant 0 : i32
    return %c0_i32, %arg0 : i32, i32
  }
  func.func @transform_6(%arg0: i32) -> (i32, i32) {
    %c0_i32 = arith.constant 0 : i32
    %c0_i32_0 = arith.constant 0 : i32
    return %c0_i32, %arg0 : i32, i32
  }
}

</mosaic_0001>

<llo_original>
// kernel: tpu_custom_call.1
$region0: #{tpu_custom_call.1}
  #allocation0 [shape = 'u32[]', space=smem, size = 0x4, offset = 0x4, fixed_abs, tag = 'smem constant byte address 0x4 - core index']
  #allocation1 [shape = 'u32[144,128]{1,0:T(1,128)}', space=vmem, size = 0x12000, scoped, tag = 'internal scratch']
  %s0 = inlined_call_operand.vmem [shape: f32[2,9,512], index: 0, kind: input, shape index: {}]
  %s1 = inlined_call_operand.vmem [shape: f32[6,9,1], index: 1, kind: input, shape index: {}]
  %s2 = inlined_call_operand.vmem [shape: f32[3,9,1], index: 2, kind: input, shape index: {}]
  %s3 = inlined_call_operand.vmem [shape: f32[12,9,1], index: 3, kind: input, shape index: {}]
  %s4 = inlined_call_operand.vmem [shape: f32[4,9,1], index: 4, kind: input, shape index: {}]
  %s5 = inlined_call_operand.hbm [shape: s32[9,512], index: 5, kind: output, shape index: {0}]
  %s6 = inlined_call_operand.hbm [shape: f32[9,512], index: 6, kind: output, shape index: {1}]
  %7 = xla_tuple %s5, %s6
  %s8 = sld [smem:[#allocation0]]
  $region38: #{tpu_custom_call.1} parent=0
    _
  %s10 = ssub.s32 1, %s8
  %s11 = scalar_select 0, %s10, %s8
  $region1: #{tpu_custom_call.1} parent=0
    #allocation2 [shape = 'u8[32768]{0}', space=vmem, size = 0x8000, scoped, tag = 'output window, operand 0, single buffered']
    #allocation3 [shape = 's32[1]{0}', space=sflag, size = 0x4, scoped, tag = 'scoped memory for tpu_custom_call.1']
    #allocation4 [shape = 'u8[32768]{0}', space=vmem, size = 0x8000, scoped, tag = 'output window, operand 1, single buffered']
    #allocation5 [shape = 's32[1]{0}', space=sflag, size = 0x4, scoped, tag = 'scoped memory for tpu_custom_call.1']
    %12 = vsyncpa [#allocation3], 0
    %13 = vsyncpa [#allocation5], 0
    // Predicated region
    $region2: #{tpu_custom_call.1} parent=1 // pred_check
      _
    $region3: #{tpu_custom_call.1} parent=1 // pred_check_branch
      %15 = sbr.rel (0) target = $region5
    $region4: #{tpu_custom_call.1} parent=1 // pred_region
      _
    $region5: #{tpu_custom_call.1} parent=1 // pred_fallthru
      _
    // Predicated region
    $region6: #{tpu_custom_call.1} parent=1 // pred_check
      _
    $region7: #{tpu_custom_call.1} parent=1 // pred_check_branch
      %17 = sbr.rel (0) target = $region9
    $region8: #{tpu_custom_call.1} parent=1 // pred_region
      _
    $region9: #{tpu_custom_call.1} parent=1 // pred_fallthru
      _
    // Predicated region
    $region10: #{tpu_custom_call.1} parent=1 // pred_check
      _
    $region11: #{tpu_custom_call.1} parent=1 // pred_check_branch
      %19 = sbr.rel (0) target = $region13
    $region12: #{tpu_custom_call.1} parent=1 // pred_region
      _
    $region13: #{tpu_custom_call.1} parent=1 // pred_fallthru
      _
    // Predicated region
    $region14: #{tpu_custom_call.1} parent=1 // pred_check
      _
    $region15: #{tpu_custom_call.1} parent=1 // pred_check_branch
      %21 = sbr.rel (0) target = $region17
    $region16: #{tpu_custom_call.1} parent=1 // pred_region
      _
    $region17: #{tpu_custom_call.1} parent=1 // pred_fallthru
      _
    // Predicated region
    $region18: #{tpu_custom_call.1} parent=1 // pred_check
      _
    $region19: #{tpu_custom_call.1} parent=1 // pred_check_branch
      %23 = sbr.rel (0) target = $region21
    $region20: #{tpu_custom_call.1} parent=1 // pred_region
      _
    $region21: #{tpu_custom_call.1} parent=1 // pred_fallthru
      _
    %v24 = vld [vmem:[%s0] sm:$0xff]
    %v25 = vld [vmem:[%s0 + $0x8] sm:$0xff]
    %v26 = vld [vmem:[%s0 + $0x10] sm:$0xff]
    %v27 = vld [vmem:[%s0 + $0x18] sm:$0xff]
    %v28 = vld [vmem:[%s0 + $0x20] sm:$0x1]
    %v29 = vld [vmem:[%s0 + $0x28] sm:$0x1]
    %v30 = vld [vmem:[%s0 + $0x30] sm:$0x1]
    %v31 = vld [vmem:[%s0 + $0x38] sm:$0x1]
    %s32 = scalar_lea.vmem %s0, 64
    %v33 = vld [vmem:[%s32] sm:$0xff]
    %v34 = vld [vmem:[%s32 + $0x8] sm:$0xff]
    %v35 = vld [vmem:[%s32 + $0x10] sm:$0xff]
    %v36 = vld [vmem:[%s32 + $0x18] sm:$0xff]
    %v37 = vld [vmem:[%s32 + $0x20] sm:$0x1]
    %v38 = vld [vmem:[%s32 + $0x28] sm:$0x1]
    %v39 = vld [vmem:[%s32 + $0x30] sm:$0x1]
    %v40 = vld [vmem:[%s32 + $0x38] sm:$0x1]
    %v41 = vld [vmem:[%s1] sm:$0xff]
    %v42 = vld [vmem:[%s1 + $0x8] sm:$0x1]
    %44 = vset.pattern.permute.xlu0 0
    %45 = vperm.xlu0 %44, %v41
    %v46 = vpop.permute.xlu0 %45
    %49 = vset.pattern.permute.xlu0 0
    %50 = vperm.xlu0 %49, %v42
    %v51 = vpop.permute.xlu0 %50
    %v53 = vmul.f32 %v24, %v46
    %v54 = vmul.f32 %v25, %v46
    %v55 = vmul.f32 %v26, %v46
    %v56 = vmul.f32 %v27, %v46
    %v57 = vmul.f32 %v28, %v51
    %v58 = vmul.f32 %v29, %v51
    %v59 = vmul.f32 %v30, %v51
    %v60 = vmul.f32 %v31, %v51
    %s61 = scalar_lea.vmem %s1, 48
    %v62 = vld [vmem:[%s61] sm:$0xff]
    %v63 = vld [vmem:[%s61 + $0x8] sm:$0x1]
    %65 = vset.pattern.permute.xlu0 0
    %66 = vperm.xlu0 %65, %v62
    %v67 = vpop.permute.xlu0 %66
    %70 = vset.pattern.permute.xlu0 0
    %71 = vperm.xlu0 %70, %v63
    %v72 = vpop.permute.xlu0 %71
    %v74 = vmul.f32 %v33, %v67
    %v75 = vmul.f32 %v34, %v67
    %v76 = vmul.f32 %v35, %v67
    %v77 = vmul.f32 %v36, %v67
    %v78 = vmul.f32 %v37, %v72
    %v79 = vmul.f32 %v38, %v72
    %v80 = vmul.f32 %v39, %v72
    %v81 = vmul.f32 %v40, %v72
    %v82 = vadd.f32 %v53, %v74
    %v83 = vadd.f32 %v54, %v75
    %v84 = vadd.f32 %v55, %v76
    %v85 = vadd.f32 %v56, %v77
    %v86 = vadd.f32 %v57, %v78
    %v87 = vadd.f32 %v58, %v79
    %v88 = vadd.f32 %v59, %v80
    %v89 = vadd.f32 %v60, %v81
    %v90 = vld [vmem:[%s2] sm:$0xff]
    %v91 = vld [vmem:[%s2 + $0x8] sm:$0x1]
    %93 = vset.pattern.permute.xlu0 0
    %94 = vperm.xlu0 %93, %v90
    %v95 = vpop.permute.xlu0 %94
    %98 = vset.pattern.permute.xlu0 0
    %99 = vperm.xlu0 %98, %v91
    %v100 = vpop.permute.xlu0 %99
    %v102 = vadd.f32 %v82, %v95
    %v103 = vadd.f32 %v83, %v95
    %v104 = vadd.f32 %v84, %v95
    %v105 = vadd.f32 %v85, %v95
    %v106 = vadd.f32 %v86, %v100
    %v107 = vadd.f32 %v87, %v100
    %v108 = vadd.f32 %v88, %v100
    %v109 = vadd.f32 %v89, %v100
    %v110 = vmax.f32 %v102, 0.0
    %v111 = vmax.f32 %v103, 0.0
    %v112 = vmax.f32 %v104, 0.0
    %v113 = vmax.f32 %v105, 0.0
    %v114 = vmax.f32 %v106, 0.0
    %v115 = vmax.f32 %v107, 0.0
    %v116 = vmax.f32 %v108, 0.0
    %v117 = vmax.f32 %v109, 0.0
    %s118 = scalar_lea.vmem %s1, 16
    %v119 = vld [vmem:[%s118] sm:$0xff]
    %v120 = vld [vmem:[%s118 + $0x8] sm:$0x1]
    %122 = vset.pattern.permute.xlu0 0
    %123 = vperm.xlu0 %122, %v119
    %v124 = vpop.permute.xlu0 %123
    %127 = vset.pattern.permute.xlu0 0
    %128 = vperm.xlu0 %127, %v120
    %v129 = vpop.permute.xlu0 %128
    %v131 = vmul.f32 %v24, %v124
    %v132 = vmul.f32 %v25, %v124
    %v133 = vmul.f32 %v26, %v124
    %v134 = vmul.f32 %v27, %v124
    %v135 = vmul.f32 %v28, %v129
    %v136 = vmul.f32 %v29, %v129
    %v137 = vmul.f32 %v30, %v129
    %v138 = vmul.f32 %v31, %v129
    %s139 = scalar_lea.vmem %s1, 64
    %v140 = vld [vmem:[%s139] sm:$0xff]
    %v141 = vld [vmem:[%s139 + $0x8] sm:$0x1]
    %143 = vset.pattern.permute.xlu0 0
    %144 = vperm.xlu0 %143, %v140
    %v145 = vpop.permute.xlu0 %144
    %148 = vset.pattern.permute.xlu0 0
    %149 = vperm.xlu0 %148, %v141
    %v150 = vpop.permute.xlu0 %149
    %v152 = vmul.f32 %v33, %v145
    %v153 = vmul.f32 %v34, %v145
    %v154 = vmul.f32 %v35, %v145
    %v155 = vmul.f32 %v36, %v145
    %v156 = vmul.f32 %v37, %v150
    %v157 = vmul.f32 %v38, %v150
    %v158 = vmul.f32 %v39, %v150
    %v159 = vmul.f32 %v40, %v150
    %v160 = vadd.f32 %v131, %v152
    %v161 = vadd.f32 %v132, %v153
    %v162 = vadd.f32 %v133, %v154
    %v163 = vadd.f32 %v134, %v155
    %v164 = vadd.f32 %v135, %v156
    %v165 = vadd.f32 %v136, %v157
    %v166 = vadd.f32 %v137, %v158
    %v167 = vadd.f32 %v138, %v159
    %s168 = scalar_lea.vmem %s2, 16
    %v169 = vld [vmem:[%s168] sm:$0xff]
    %v170 = vld [vmem:[%s168 + $0x8] sm:$0x1]
    %172 = vset.pattern.permute.xlu0 0
    %173 = vperm.xlu0 %172, %v169
    %v174 = vpop.permute.xlu0 %173
    %177 = vset.pattern.permute.xlu0 0
    %178 = vperm.xlu0 %177, %v170
    %v179 = vpop.permute.xlu0 %178
    %v181 = vadd.f32 %v160, %v174
    %v182 = vadd.f32 %v161, %v174
    %v183 = vadd.f32 %v162, %v174
    %v184 = vadd.f32 %v163, %v174
    %v185 = vadd.f32 %v164, %v179
    %v186 = vadd.f32 %v165, %v179
    %v187 = vadd.f32 %v166, %v179
    %v188 = vadd.f32 %v167, %v179
    %v189 = vmax.f32 %v181, 0.0
    %v190 = vmax.f32 %v182, 0.0
    %v191 = vmax.f32 %v183, 0.0
    %v192 = vmax.f32 %v184, 0.0
    %v193 = vmax.f32 %v185, 0.0
    %v194 = vmax.f32 %v186, 0.0
    %v195 = vmax.f32 %v187, 0.0
    %v196 = vmax.f32 %v188, 0.0
    %s197 = scalar_lea.vmem %s1, 32
    %v198 = vld [vmem:[%s197] sm:$0xff]
    %v199 = vld [vmem:[%s197 + $0x8] sm:$0x1]
    %201 = vset.pattern.permute.xlu0 0
    %202 = vperm.xlu0 %201, %v198
    %v203 = vpop.permute.xlu0 %202
    %206 = vset.pattern.permute.xlu0 0
    %207 = vperm.xlu0 %206, %v199
    %v208 = vpop.permute.xlu0 %207
    %v210 = vmul.f32 %v24, %v203
    %v211 = vmul.f32 %v25, %v203
    %v212 = vmul.f32 %v26, %v203
    %v213 = vmul.f32 %v27, %v203
    %v214 = vmul.f32 %v28, %v208
    %v215 = vmul.f32 %v29, %v208
    %v216 = vmul.f32 %v30, %v208
    %v217 = vmul.f32 %v31, %v208
    %s218 = scalar_lea.vmem %s1, 80
    %v219 = vld [vmem:[%s218] sm:$0xff]
    %v220 = vld [vmem:[%s218 + $0x8] sm:$0x1]
    %222 = vset.pattern.permute.xlu0 0
    %223 = vperm.xlu0 %222, %v219
    %v224 = vpop.permute.xlu0 %223
    %227 = vset.pattern.permute.xlu0 0
    %228 = vperm.xlu0 %227, %v220
    %v229 = vpop.permute.xlu0 %228
    %v231 = vmul.f32 %v33, %v224
    %v232 = vmul.f32 %v34, %v224
    %v233 = vmul.f32 %v35, %v224
    %v234 = vmul.f32 %v36, %v224
    %v235 = vmul.f32 %v37, %v229
    %v236 = vmul.f32 %v38, %v229
    %v237 = vmul.f32 %v39, %v229
    %v238 = vmul.f32 %v40, %v229
    %v239 = vadd.f32 %v210, %v231
    %v240 = vadd.f32 %v211, %v232
    %v241 = vadd.f32 %v212, %v233
    %v242 = vadd.f32 %v213, %v234
    %v243 = vadd.f32 %v214, %v235
    %v244 = vadd.f32 %v215, %v236
    %v245 = vadd.f32 %v216, %v237
    %v246 = vadd.f32 %v217, %v238
    %s247 = scalar_lea.vmem %s2, 32
    %v248 = vld [vmem:[%s247] sm:$0xff]
    %v249 = vld [vmem:[%s247 + $0x8] sm:$0x1]
    %251 = vset.pattern.permute.xlu0 0
    %252 = vperm.xlu0 %251, %v248
    %v253 = vpop.permute.xlu0 %252
    %256 = vset.pattern.permute.xlu0 0
    %257 = vperm.xlu0 %256, %v249
    %v258 = vpop.permute.xlu0 %257
    %v260 = vadd.f32 %v239, %v253
    %v261 = vadd.f32 %v240, %v253
    %v262 = vadd.f32 %v241, %v253
    %v263 = vadd.f32 %v242, %v253
    %v264 = vadd.f32 %v243, %v258
    %v265 = vadd.f32 %v244, %v258
    %v266 = vadd.f32 %v245, %v258
    %v267 = vadd.f32 %v246, %v258
    %v268 = vmax.f32 %v260, 0.0
    %v269 = vmax.f32 %v261, 0.0
    %v270 = vmax.f32 %v262, 0.0
    %v271 = vmax.f32 %v263, 0.0
    %v272 = vmax.f32 %v264, 0.0
    %v273 = vmax.f32 %v265, 0.0
    %v274 = vmax.f32 %v266, 0.0
    %v275 = vmax.f32 %v267, 0.0
    %v276 = vld [vmem:[%s3] sm:$0xff]
    %v277 = vld [vmem:[%s3 + $0x8] sm:$0x1]
    %279 = vset.pattern.permute.xlu0 0
    %280 = vperm.xlu0 %279, %v276
    %v281 = vpop.permute.xlu0 %280
    %284 = vset.pattern.permute.xlu0 0
    %285 = vperm.xlu0 %284, %v277
    %v286 = vpop.permute.xlu0 %285
    %v288 = vmul.f32 %v110, %v281
    %v289 = vmul.f32 %v111, %v281
    %v290 = vmul.f32 %v112, %v281
    %v291 = vmul.f32 %v113, %v281
    %v292 = vmul.f32 %v114, %v286
    %v293 = vmul.f32 %v115, %v286
    %v294 = vmul.f32 %v116, %v286
    %v295 = vmul.f32 %v117, %v286
    %s296 = scalar_lea.vmem %s3, 64
    %v297 = vld [vmem:[%s296] sm:$0xff]
    %v298 = vld [vmem:[%s296 + $0x8] sm:$0x1]
    %300 = vset.pattern.permute.xlu0 0
    %301 = vperm.xlu0 %300, %v297
    %v302 = vpop.permute.xlu0 %301
    %305 = vset.pattern.permute.xlu0 0
    %306 = vperm.xlu0 %305, %v298
    %v307 = vpop.permute.xlu0 %306
    %v309 = vmul.f32 %v189, %v302
    %v310 = vmul.f32 %v190, %v302
    %v311 = vmul.f32 %v191, %v302
    %v312 = vmul.f32 %v192, %v302
    %v313 = vmul.f32 %v193, %v307
    %v314 = vmul.f32 %v194, %v307
    %v315 = vmul.f32 %v195, %v307
    %v316 = vmul.f32 %v196, %v307
    %v317 = vadd.f32 %v288, %v309
    %v318 = vadd.f32 %v289, %v310
    %v319 = vadd.f32 %v290, %v311
    %v320 = vadd.f32 %v291, %v312
    %v321 = vadd.f32 %v292, %v313
    %v322 = vadd.f32 %v293, %v314
    %v323 = vadd.f32 %v294, %v315
    %v324 = vadd.f32 %v295, %v316
    %s325 = scalar_lea.vmem %s3, 128
    %v326 = vld [vmem:[%s325] sm:$0xff]
    %v327 = vld [vmem:[%s325 + $0x8] sm:$0x1]
    %329 = vset.pattern.permute.xlu0 0
    %330 = vperm.xlu0 %329, %v326
    %v331 = vpop.permute.xlu0 %330
    %334 = vset.pattern.permute.xlu0 0
    %335 = vperm.xlu0 %334, %v327
    %v336 = vpop.permute.xlu0 %335
    %v338 = vmul.f32 %v268, %v331
    %v339 = vmul.f32 %v269, %v331
    %v340 = vmul.f32 %v270, %v331
    %v341 = vmul.f32 %v271, %v331
    %v342 = vmul.f32 %v272, %v336
    %v343 = vmul.f32 %v273, %v336
    %v344 = vmul.f32 %v274, %v336
    %v345 = vmul.f32 %v275, %v336
    %v346 = vadd.f32 %v317, %v338
    %v347 = vadd.f32 %v318, %v339
    %v348 = vadd.f32 %v319, %v340
    %v349 = vadd.f32 %v320, %v341
    %v350 = vadd.f32 %v321, %v342
    %v351 = vadd.f32 %v322, %v343
    %v352 = vadd.f32 %v323, %v344
    %v353 = vadd.f32 %v324, %v345
    %v354 = vld [vmem:[%s4] sm:$0xff]
    %v355 = vld [vmem:[%s4 + $0x8] sm:$0x1]
    %357 = vset.pattern.permute.xlu0 0
    %358 = vperm.xlu0 %357, %v354
    %v359 = vpop.permute.xlu0 %358
    %362 = vset.pattern.permute.xlu0 0
    %363 = vperm.xlu0 %362, %v355
    %v364 = vpop.permute.xlu0 %363
    %v366 = vadd.f32 %v346, %v359
    %v367 = vadd.f32 %v347, %v359
    %v368 = vadd.f32 %v348, %v359
    %v369 = vadd.f32 %v349, %v359
    %v370 = vadd.f32 %v350, %v364
    %v371 = vadd.f32 %v351, %v364
    %v372 = vadd.f32 %v352, %v364
    %v373 = vadd.f32 %v353, %v364
    %s374 = scalar_lea.vmem %s3, 16
    %v375 = vld [vmem:[%s374] sm:$0xff]
    %v376 = vld [vmem:[%s374 + $0x8] sm:$0x1]
    %378 = vset.pattern.permute.xlu0 0
    %379 = vperm.xlu0 %378, %v375
    %v380 = vpop.permute.xlu0 %379
    %383 = vset.pattern.permute.xlu0 0
    %384 = vperm.xlu0 %383, %v376
    %v385 = vpop.permute.xlu0 %384
    %v387 = vmul.f32 %v110, %v380
    %v388 = vmul.f32 %v111, %v380
    %v389 = vmul.f32 %v112, %v380
    %v390 = vmul.f32 %v113, %v380
    %v391 = vmul.f32 %v114, %v385
    %v392 = vmul.f32 %v115, %v385
    %v393 = vmul.f32 %v116, %v385
    %v394 = vmul.f32 %v117, %v385
    %s395 = scalar_lea.vmem %s3, 80
    %v396 = vld [vmem:[%s395] sm:$0xff]
    %v397 = vld [vmem:[%s395 + $0x8] sm:$0x1]
    %399 = vset.pattern.permute.xlu0 0
    %400 = vperm.xlu0 %399, %v396
    %v401 = vpop.permute.xlu0 %400
    %404 = vset.pattern.permute.xlu0 0
    %405 = vperm.xlu0 %404, %v397
    %v406 = vpop.permute.xlu0 %405
    %v408 = vmul.f32 %v189, %v401
    %v409 = vmul.f32 %v190, %v401
    %v410 = vmul.f32 %v191, %v401
    %v411 = vmul.f32 %v192, %v401
    %v412 = vmul.f32 %v193, %v406
    %v413 = vmul.f32 %v194, %v406
    %v414 = vmul.f32 %v195, %v406
    %v415 = vmul.f32 %v196, %v406
    %v416 = vadd.f32 %v387, %v408
    %v417 = vadd.f32 %v388, %v409
    %v418 = vadd.f32 %v389, %v410
    %v419 = vadd.f32 %v390, %v411
    %v420 = vadd.f32 %v391, %v412
    %v421 = vadd.f32 %v392, %v413
    %v422 = vadd.f32 %v393, %v414
    %v423 = vadd.f32 %v394, %v415
    %s424 = scalar_lea.vmem %s3, 144
    %v425 = vld [vmem:[%s424] sm:$0xff]
    %v426 = vld [vmem:[%s424 + $0x8] sm:$0x1]
    %428 = vset.pattern.permute.xlu0 0
    %429 = vperm.xlu0 %428, %v425
    %v430 = vpop.permute.xlu0 %429
    %433 = vset.pattern.permute.xlu0 0
    %434 = vperm.xlu0 %433, %v426
    %v435 = vpop.permute.xlu0 %434
    %v437 = vmul.f32 %v268, %v430
    %v438 = vmul.f32 %v269, %v430
    %v439 = vmul.f32 %v270, %v430
    %v440 = vmul.f32 %v271, %v430
    %v441 = vmul.f32 %v272, %v435
    %v442 = vmul.f32 %v273, %v435
    %v443 = vmul.f32 %v274, %v435
    %v444 = vmul.f32 %v275, %v435
    %v445 = vadd.f32 %v416, %v437
    %v446 = vadd.f32 %v417, %v438
    %v447 = vadd.f32 %v418, %v439
    %v448 = vadd.f32 %v419, %v440
    %v449 = vadd.f32 %v420, %v441
    %v450 = vadd.f32 %v421, %v442
    %v451 = vadd.f32 %v422, %v443
    %v452 = vadd.f32 %v423, %v444
    %s453 = scalar_lea.vmem %s4, 16
    %v454 = vld [vmem:[%s453] sm:$0xff]
    %v455 = vld [vmem:[%s453 + $0x8] sm:$0x1]
    %457 = vset.pattern.permute.xlu0 0
    %458 = vperm.xlu0 %457, %v454
    %v459 = vpop.permute.xlu0 %458
    %462 = vset.pattern.permute.xlu0 0
    %463 = vperm.xlu0 %462, %v455
    %v464 = vpop.permute.xlu0 %463
    %v466 = vadd.f32 %v445, %v459
    %v467 = vadd.f32 %v446, %v459
    %v468 = vadd.f32 %v447, %v459
    %v469 = vadd.f32 %v448, %v459
    %v470 = vadd.f32 %v449, %v464
    %v471 = vadd.f32 %v450, %v464
    %v472 = vadd.f32 %v451, %v464
    %v473 = vadd.f32 %v452, %v464
    %s474 = scalar_lea.vmem %s3, 32
    %v475 = vld [vmem:[%s474] sm:$0xff]
    %v476 = vld [vmem:[%s474 + $0x8] sm:$0x1]
    %478 = vset.pattern.permute.xlu0 0
    %479 = vperm.xlu0 %478, %v475
    %v480 = vpop.permute.xlu0 %479
    %483 = vset.pattern.permute.xlu0 0
    %484 = vperm.xlu0 %483, %v476
    %v485 = vpop.permute.xlu0 %484
    %v487 = vmul.f32 %v110, %v480
    %v488 = vmul.f32 %v111, %v480
    %v489 = vmul.f32 %v112, %v480
    %v490 = vmul.f32 %v113, %v480
    %v491 = vmul.f32 %v114, %v485
    %v492 = vmul.f32 %v115, %v485
    %v493 = vmul.f32 %v116, %v485
    %v494 = vmul.f32 %v117, %v485
    %s495 = scalar_lea.vmem %s3, 96
    %v496 = vld [vmem:[%s495] sm:$0xff]
    %v497 = vld [vmem:[%s495 + $0x8] sm:$0x1]
    %499 = vset.pattern.permute.xlu0 0
    %500 = vperm.xlu0 %499, %v496
    %v501 = vpop.permute.xlu0 %500
    %504 = vset.pattern.permute.xlu0 0
    %505 = vperm.xlu0 %504, %v497
    %v506 = vpop.permute.xlu0 %505
    %v508 = vmul.f32 %v189, %v501
    %v509 = vmul.f32 %v190, %v501
    %v510 = vmul.f32 %v191, %v501
    %v511 = vmul.f32 %v192, %v501
    %v512 = vmul.f32 %v193, %v506
    %v513 = vmul.f32 %v194, %v506
    %v514 = vmul.f32 %v195, %v506
    %v515 = vmul.f32 %v196, %v506
    %v516 = vadd.f32 %v487, %v508
    %v517 = vadd.f32 %v488, %v509
    %v518 = vadd.f32 %v489, %v510
    %v519 = vadd.f32 %v490, %v511
    %v520 = vadd.f32 %v491, %v512
    %v521 = vadd.f32 %v492, %v513
    %v522 = vadd.f32 %v493, %v514
    %v523 = vadd.f32 %v494, %v515
    %s524 = scalar_lea.vmem %s3, 160
    %v525 = vld [vmem:[%s524] sm:$0xff]
    %v526 = vld [vmem:[%s524 + $0x8] sm:$0x1]
    %528 = vset.pattern.permute.xlu0 0
    %529 = vperm.xlu0 %528, %v525
    %v530 = vpop.permute.xlu0 %529
    %533 = vset.pattern.permute.xlu0 0
    %534 = vperm.xlu0 %533, %v526
    %v535 = vpop.permute.xlu0 %534
    %v537 = vmul.f32 %v268, %v530
    %v538 = vmul.f32 %v269, %v530
    %v539 = vmul.f32 %v270, %v530
    %v540 = vmul.f32 %v271, %v530
    %v541 = vmul.f32 %v272, %v535
    %v542 = vmul.f32 %v273, %v535
    %v543 = vmul.f32 %v274, %v535
    %v544 = vmul.f32 %v275, %v535
    %v545 = vadd.f32 %v516, %v537
    %v546 = vadd.f32 %v517, %v538
    %v547 = vadd.f32 %v518, %v539
    %v548 = vadd.f32 %v519, %v540
    %v549 = vadd.f32 %v520, %v541
    %v550 = vadd.f32 %v521, %v542
    %v551 = vadd.f32 %v522, %v543
    %v552 = vadd.f32 %v523, %v544
    %s553 = scalar_lea.vmem %s4, 32
    %v554 = vld [vmem:[%s553] sm:$0xff]
    %v555 = vld [vmem:[%s553 + $0x8] sm:$0x1]
    %557 = vset.pattern.permute.xlu0 0
    %558 = vperm.xlu0 %557, %v554
    %v559 = vpop.permute.xlu0 %558
    %562 = vset.pattern.permute.xlu0 0
    %563 = vperm.xlu0 %562, %v555
    %v564 = vpop.permute.xlu0 %563
    %v566 = vadd.f32 %v545, %v559
    %v567 = vadd.f32 %v546, %v559
    %v568 = vadd.f32 %v547, %v559
    %v569 = vadd.f32 %v548, %v559
    %v570 = vadd.f32 %v549, %v564
    %v571 = vadd.f32 %v550, %v564
    %v572 = vadd.f32 %v551, %v564
    %v573 = vadd.f32 %v552, %v564
    %s574 = scalar_lea.vmem %s3, 48
    %v575 = vld [vmem:[%s574] sm:$0xff]
    %v576 = vld [vmem:[%s574 + $0x8] sm:$0x1]
    %578 = vset.pattern.permute.xlu0 0
    %579 = vperm.xlu0 %578, %v575
    %v580 = vpop.permute.xlu0 %579
    %583 = vset.pattern.permute.xlu0 0
    %584 = vperm.xlu0 %583, %v576
    %v585 = vpop.permute.xlu0 %584
    %v587 = vmul.f32 %v110, %v580
    %v588 = vmul.f32 %v111, %v580
    %v589 = vmul.f32 %v112, %v580
    %v590 = vmul.f32 %v113, %v580
    %v591 = vmul.f32 %v114, %v585
    %v592 = vmul.f32 %v115, %v585
    %v593 = vmul.f32 %v116, %v585
    %v594 = vmul.f32 %v117, %v585
    %s595 = scalar_lea.vmem %s3, 112
    %v596 = vld [vmem:[%s595] sm:$0xff]
    %v597 = vld [vmem:[%s595 + $0x8] sm:$0x1]
    %599 = vset.pattern.permute.xlu0 0
    %600 = vperm.xlu0 %599, %v596
    %v601 = vpop.permute.xlu0 %600
    %604 = vset.pattern.permute.xlu0 0
    %605 = vperm.xlu0 %604, %v597
    %v606 = vpop.permute.xlu0 %605
    %v608 = vmul.f32 %v189, %v601
    %v609 = vmul.f32 %v190, %v601
    %v610 = vmul.f32 %v191, %v601
    %v611 = vmul.f32 %v192, %v601
    %v612 = vmul.f32 %v193, %v606
    %v613 = vmul.f32 %v194, %v606
    %v614 = vmul.f32 %v195, %v606
    %v615 = vmul.f32 %v196, %v606
    %v616 = vadd.f32 %v587, %v608
    %v617 = vadd.f32 %v588, %v609
    %v618 = vadd.f32 %v589, %v610
    %v619 = vadd.f32 %v590, %v611
    %v620 = vadd.f32 %v591, %v612
    %v621 = vadd.f32 %v592, %v613
    %v622 = vadd.f32 %v593, %v614
    %v623 = vadd.f32 %v594, %v615
    %s624 = scalar_lea.vmem %s3, 176
    %v625 = vld [vmem:[%s624] sm:$0xff]
    %v626 = vld [vmem:[%s624 + $0x8] sm:$0x1]
    %628 = vset.pattern.permute.xlu0 0
    %629 = vperm.xlu0 %628, %v625
    %v630 = vpop.permute.xlu0 %629
    %633 = vset.pattern.permute.xlu0 0
    %634 = vperm.xlu0 %633, %v626
    %v635 = vpop.permute.xlu0 %634
    %v637 = vmul.f32 %v268, %v630
    %v638 = vmul.f32 %v269, %v630
    %v639 = vmul.f32 %v270, %v630
    %v640 = vmul.f32 %v271, %v630
    %v641 = vmul.f32 %v272, %v635
    %v642 = vmul.f32 %v273, %v635
    %v643 = vmul.f32 %v274, %v635
    %v644 = vmul.f32 %v275, %v635
    %v645 = vadd.f32 %v616, %v637
    %v646 = vadd.f32 %v617, %v638
    %v647 = vadd.f32 %v618, %v639
    %v648 = vadd.f32 %v619, %v640
    %v649 = vadd.f32 %v620, %v641
    %v650 = vadd.f32 %v621, %v642
    %v651 = vadd.f32 %v622, %v643
    %v652 = vadd.f32 %v623, %v644
    %s653 = scalar_lea.vmem %s4, 48
    %v654 = vld [vmem:[%s653] sm:$0xff]
    %v655 = vld [vmem:[%s653 + $0x8] sm:$0x1]
    %657 = vset.pattern.permute.xlu0 0
    %658 = vperm.xlu0 %657, %v654
    %v659 = vpop.permute.xlu0 %658
    %662 = vset.pattern.permute.xlu0 0
    %663 = vperm.xlu0 %662, %v655
    %v664 = vpop.permute.xlu0 %663
    %v666 = vadd.f32 %v645, %v659
    %v667 = vadd.f32 %v646, %v659
    %v668 = vadd.f32 %v647, %v659
    %v669 = vadd.f32 %v648, %v659
    %v670 = vadd.f32 %v649, %v664
    %v671 = vadd.f32 %v650, %v664
    %v672 = vadd.f32 %v651, %v664
    %v673 = vadd.f32 %v652, %v664
    %v674 = vmax.f32 %v366, %v466
    %v675 = vmax.f32 %v367, %v467
    %v676 = vmax.f32 %v368, %v468
    %v677 = vmax.f32 %v369, %v469
    %v678 = vmax.f32 %v370, %v470
    %v679 = vmax.f32 %v371, %v471
    %v680 = vmax.f32 %v372, %v472
    %v681 = vmax.f32 %v373, %v473
    %v682 = vmax.f32 %v566, %v666
    %v683 = vmax.f32 %v567, %v667
    %v684 = vmax.f32 %v568, %v668
    %v685 = vmax.f32 %v569, %v669
    %v686 = vmax.f32 %v570, %v670
    %v687 = vmax.f32 %v571, %v671
    %v688 = vmax.f32 %v572, %v672
    %v689 = vmax.f32 %v573, %v673
    %v690 = vmax.f32 %v674, %v682
    %v691 = vmax.f32 %v675, %v683
    %v692 = vmax.f32 %v676, %v684
    %v693 = vmax.f32 %v677, %v685
    %v694 = vmax.f32 %v678, %v686
    %v695 = vmax.f32 %v679, %v687
    %v696 = vmax.f32 %v680, %v688
    %v697 = vmax.f32 %v681, %v689
    %v698 = vsub.f32 %v366, %v690
    %v699 = vsub.f32 %v367, %v691
    %v700 = vsub.f32 %v368, %v692
    %v701 = vsub.f32 %v369, %v693
    %v702 = vsub.f32 %v370, %v694
    %v703 = vsub.f32 %v371, %v695
    %v704 = vsub.f32 %v372, %v696
    %v705 = vsub.f32 %v373, %v697
    %v706 = vmul.f32 %v698, 1.442695
    %v707 = vpow.pop %v706
    %v708 = vmul.f32 %v699, 1.442695
    %v709 = vpow.pop %v708
    %v710 = vmul.f32 %v700, 1.442695
    %v711 = vpow.pop %v710
    %v712 = vmul.f32 %v701, 1.442695
    %v713 = vpow.pop %v712
    %v714 = vmul.f32 %v702, 1.442695
    %v715 = vpow.pop %v714
    %v716 = vmul.f32 %v703, 1.442695
    %v717 = vpow.pop %v716
    %v718 = vmul.f32 %v704, 1.442695
    %v719 = vpow.pop %v718
    %v720 = vmul.f32 %v705, 1.442695
    %v721 = vpow.pop %v720
    %v722 = vsub.f32 %v466, %v690
    %v723 = vsub.f32 %v467, %v691
    %v724 = vsub.f32 %v468, %v692
    %v725 = vsub.f32 %v469, %v693
    %v726 = vsub.f32 %v470, %v694
    %v727 = vsub.f32 %v471, %v695
    %v728 = vsub.f32 %v472, %v696
    %v729 = vsub.f32 %v473, %v697
    %v730 = vmul.f32 %v722, 1.442695
    %v731 = vpow.pop %v730
    %v732 = vmul.f32 %v723, 1.442695
    %v733 = vpow.pop %v732
    %v734 = vmul.f32 %v724, 1.442695
    %v735 = vpow.pop %v734
    %v736 = vmul.f32 %v725, 1.442695
    %v737 = vpow.pop %v736
    %v738 = vmul.f32 %v726, 1.442695
    %v739 = vpow.pop %v738
    %v740 = vmul.f32 %v727, 1.442695
    %v741 = vpow.pop %v740
    %v742 = vmul.f32 %v728, 1.442695
    %v743 = vpow.pop %v742
    %v744 = vmul.f32 %v729, 1.442695
    %v745 = vpow.pop %v744
    %v746 = vadd.f32 %v707, %v731
    %v747 = vadd.f32 %v709, %v733
    %v748 = vadd.f32 %v711, %v735
    %v749 = vadd.f32 %v713, %v737
    %v750 = vadd.f32 %v715, %v739
    %v751 = vadd.f32 %v717, %v741
    %v752 = vadd.f32 %v719, %v743
    %v753 = vadd.f32 %v721, %v745
    %v754 = vsub.f32 %v566, %v690
    %v755 = vsub.f32 %v567, %v691
    %v756 = vsub.f32 %v568, %v692
    %v757 = vsub.f32 %v569, %v693
    %v758 = vsub.f32 %v570, %v694
    %v759 = vsub.f32 %v571, %v695
    %v760 = vsub.f32 %v572, %v696
    %v761 = vsub.f32 %v573, %v697
    %v762 = vmul.f32 %v754, 1.442695
    %v763 = vpow.pop %v762
    %v764 = vmul.f32 %v755, 1.442695
    %v765 = vpow.pop %v764
    %v766 = vmul.f32 %v756, 1.442695
    %v767 = vpow.pop %v766
    %v768 = vmul.f32 %v757, 1.442695
    %v769 = vpow.pop %v768
    %v770 = vmul.f32 %v758, 1.442695
    %v771 = vpow.pop %v770
    %v772 = vmul.f32 %v759, 1.442695
    %v773 = vpow.pop %v772
    %v774 = vmul.f32 %v760, 1.442695
    %v775 = vpow.pop %v774
    %v776 = vmul.f32 %v761, 1.442695
    %v777 = vpow.pop %v776
    %v778 = vadd.f32 %v746, %v763
    %v779 = vadd.f32 %v747, %v765
    %v780 = vadd.f32 %v748, %v767
    %v781 = vadd.f32 %v749, %v769
    %v782 = vadd.f32 %v750, %v771
    %v783 = vadd.f32 %v751, %v773
    %v784 = vadd.f32 %v752, %v775
    %v785 = vadd.f32 %v753, %v777
    %v786 = vsub.f32 %v666, %v690
    %v787 = vsub.f32 %v667, %v691
    %v788 = vsub.f32 %v668, %v692
    %v789 = vsub.f32 %v669, %v693
    %v790 = vsub.f32 %v670, %v694
    %v791 = vsub.f32 %v671, %v695
    %v792 = vsub.f32 %v672, %v696
    %v793 = vsub.f32 %v673, %v697
    %v794 = vmul.f32 %v786, 1.442695
    %v795 = vpow.pop %v794
    %v796 = vmul.f32 %v787, 1.442695
    %v797 = vpow.pop %v796
    %v798 = vmul.f32 %v788, 1.442695
    %v799 = vpow.pop %v798
    %v800 = vmul.f32 %v789, 1.442695
    %v801 = vpow.pop %v800
    %v802 = vmul.f32 %v790, 1.442695
    %v803 = vpow.pop %v802
    %v804 = vmul.f32 %v791, 1.442695
    %v805 = vpow.pop %v804
    %v806 = vmul.f32 %v792, 1.442695
    %v807 = vpow.pop %v806
    %v808 = vmul.f32 %v793, 1.442695
    %v809 = vpow.pop %v808
    %v810 = vadd.f32 %v778, %v795
    %v811 = vadd.f32 %v779, %v797
    %v812 = vadd.f32 %v780, %v799
    %v813 = vadd.f32 %v781, %v801
    %v814 = vadd.f32 %v782, %v803
    %v815 = vadd.f32 %v783, %v805
    %v816 = vadd.f32 %v784, %v807
    %v817 = vadd.f32 %v785, %v809
    %v818 = vrcp.pop %v810
    %v819 = vrcp.pop %v811
    %v820 = vrcp.pop %v812
    %v821 = vrcp.pop %v813
    %v822 = vrcp.pop %v814
    %v823 = vrcp.pop %v815
    %v824 = vrcp.pop %v816
    %v825 = vrcp.pop %v817
    %826 = vst [vmem:[#allocation4] sm:$0xff] %v818
    %827 = vst [vmem:[#allocation4 + $0x8] sm:$0xff] %v819
    %828 = vst [vmem:[#allocation4 + $0x10] sm:$0xff] %v820
    %829 = vst [vmem:[#allocation4 + $0x18] sm:$0xff] %v821
    %830 = vst [vmem:[#allocation4 + $0x20] sm:$0x1] %v822
    %831 = vst [vmem:[#allocation4 + $0x28] sm:$0x1] %v823
    %832 = vst [vmem:[#allocation4 + $0x30] sm:$0x1] %v824
    %833 = vst [vmem:[#allocation4 + $0x38] sm:$0x1] %v825
    %vm834 = vcmp.eq.f32.partialorder %v366, %v690
    %vm835 = vcmp.eq.f32.partialorder %v367, %v691
    %vm836 = vcmp.eq.f32.partialorder %v368, %v692
    %vm837 = vcmp.eq.f32.partialorder %v369, %v693
    %vm838 = vcmp.eq.f32.partialorder %v370, %v694
    %vm839 = vcmp.eq.f32.partialorder %v371, %v695
    %vm840 = vcmp.eq.f32.partialorder %v372, %v696
    %vm841 = vcmp.eq.f32.partialorder %v373, %v697
    %vm842 = vcmp.eq.f32.partialorder %v466, %v690
    %vm843 = vcmp.eq.f32.partialorder %v467, %v691
    %vm844 = vcmp.eq.f32.partialorder %v468, %v692
    %vm845 = vcmp.eq.f32.partialorder %v469, %v693
    %vm846 = vcmp.eq.f32.partialorder %v470, %v694
    %vm847 = vcmp.eq.f32.partialorder %v471, %v695
    %vm848 = vcmp.eq.f32.partialorder %v472, %v696
    %vm849 = vcmp.eq.f32.partialorder %v473, %v697
    %vm850 = vcmp.eq.f32.partialorder %v566, %v690
    %vm851 = vcmp.eq.f32.partialorder %v567, %v691
    %vm852 = vcmp.eq.f32.partialorder %v568, %v692
    %vm853 = vcmp.eq.f32.partialorder %v569, %v693
    %vm854 = vcmp.eq.f32.partialorder %v570, %v694
    %vm855 = vcmp.eq.f32.partialorder %v571, %v695
    %vm856 = vcmp.eq.f32.partialorder %v572, %v696
    %vm857 = vcmp.eq.f32.partialorder %v573, %v697
    %v858 = vsel %vm850, 2, 3
    %v859 = vsel %vm851, 2, 3
    %v860 = vsel %vm852, 2, 3
    %v861 = vsel %vm853, 2, 3
    %v862 = vsel %vm854, 2, 3
    %v863 = vsel %vm855, 2, 3
    %v864 = vsel %vm856, 2, 3
    %v865 = vsel %vm857, 2, 3
    %v866 = vsel %vm842, 1, %v858
    %v867 = vsel %vm843, 1, %v859
    %v868 = vsel %vm844, 1, %v860
    %v869 = vsel %vm845, 1, %v861
    %v870 = vsel %vm846, 1, %v862
    %v871 = vsel %vm847, 1, %v863
    %v872 = vsel %vm848, 1, %v864
    %v873 = vsel %vm849, 1, %v865
    %v874 = vsel %vm834, 0, %v866
    %v875 = vsel %vm835, 0, %v867
    %v876 = vsel %vm836, 0, %v868
    %v877 = vsel %vm837, 0, %v869
    %v878 = vsel %vm838, 0, %v870
    %v879 = vsel %vm839, 0, %v871
    %v880 = vsel %vm840, 0, %v872
    %v881 = vsel %vm841, 0, %v873
    %882 = vst [vmem:[#allocation2] sm:$0xff] %v874
    %883 = vst [vmem:[#allocation2 + $0x8] sm:$0xff] %v875
    %884 = vst [vmem:[#allocation2 + $0x10] sm:$0xff] %v876
    %885 = vst [vmem:[#allocation2 + $0x18] sm:$0xff] %v877
    %886 = vst [vmem:[#allocation2 + $0x20] sm:$0x1] %v878
    %887 = vst [vmem:[#allocation2 + $0x28] sm:$0x1] %v879
    %888 = vst [vmem:[#allocation2 + $0x30] sm:$0x1] %v880
    %889 = vst [vmem:[#allocation2 + $0x38] sm:$0x1] %v881
    // Predicated region
    $region22: #{tpu_custom_call.1} parent=1 // pred_check
      _
    $region23: #{tpu_custom_call.1} parent=1 // pred_check_branch
      %891 = sbr.rel (0) target = $region25
    $region24: #{tpu_custom_call.1} parent=1 // pred_region
      %s893 = ssub.s32 1024, 1024
      %894 = vsyncadd [#allocation3], %s893
      %s895 = sshll.u32 [#allocation2], 4
      %s896 = int_to_ptr.vmem [resolvable:$true] %s895
      %901 = dma.vmem_to_hbm [thread:$0]  %s896, 1024, %s5, [#allocation3], 512, 512, 32
    $region25: #{tpu_custom_call.1} parent=1 // pred_fallthru
      _
    // Predicated region
    $region26: #{tpu_custom_call.1} parent=1 // pred_check
      _
    $region27: #{tpu_custom_call.1} parent=1 // pred_check_branch
      %903 = sbr.rel (0) target = $region29
    $region28: #{tpu_custom_call.1} parent=1 // pred_region
      %s905 = ssub.s32 1024, 1024
      %906 = vsyncadd [#allocation5], %s905
      %s907 = sshll.u32 [#allocation4], 4
      %s908 = int_to_ptr.vmem [resolvable:$true] %s907
      %913 = dma.vmem_to_hbm [thread:$0]  %s908, 1024, %s6, [#allocation5], 512, 512, 32
    $region29: #{tpu_custom_call.1} parent=1 // pred_fallthru
      _
    // Predicated region
    $region30: #{tpu_custom_call.1} parent=1 // pred_check
      _
    $region31: #{tpu_custom_call.1} parent=1 // pred_check_branch
      %915 = sbr.rel (0) target = $region33
    $region32: #{tpu_custom_call.1} parent=1 // pred_region
      %916 = dma.done [#allocation3], 1024
    $region33: #{tpu_custom_call.1} parent=1 // pred_fallthru
      _
    // Predicated region
    $region34: #{tpu_custom_call.1} parent=1 // pred_check
      _
    $region35: #{tpu_custom_call.1} parent=1 // pred_check_branch
      %918 = sbr.rel (0) target = $region37
    $region36: #{tpu_custom_call.1} parent=1 // pred_region
      %919 = dma.done [#allocation5], 1024
    $region37: #{tpu_custom_call.1} parent=1 // pred_fallthru
      _
    %920 = vsyncpa [#allocation3], 1
    %921 = vsyncpa [#allocation5], 1

</llo_original>
